<compile_context>
chip_gen: v7x
topology: tpu7x:2x2x1
jax: 0.10.0
libtpu: 0.0.40
codegen_flags: <defaults>
</compile_context>

<pallas_src>
import math

import jax
import jax.numpy as jnp
from jax.experimental import pallas as pl
from jax.experimental.pallas import tpu as pltpu


def _adaptive_windows(t_in: int, t_out: int):
    """Adaptive-pool windows along T, matching torch AdaptiveAvgPool3d:
    start = floor(t * T / T_out), end = ceil((t + 1) * T / T_out)."""
    windows = []
    for t in range(t_out):
        start = (t * t_in) // t_out
        end = math.ceil((t + 1) * t_in / t_out)
        windows.append((start, end))
    return windows


def _make_pool_kernel(t_in: int, t_out: int, hw: int):
    """Kernel over a (TILE_BC, T*HW) input block -> (TILE_BC, t_out*HW) output.

    The adaptive windows are static Python constants (no weight tensor is
    passed into pallas_call); each output temporal slot is an unrolled VPU
    weighted sum of 128-aligned lane chunks, accumulated in f32.
    """
    windows = _adaptive_windows(t_in, t_out)

    def kernel(x_ref, o_ref):
        x = x_ref[...].astype(jnp.float32)              # (TILE_BC, T*HW), one cast
        for t, (start, end) in enumerate(windows):
            inv = 1.0 / float(end - start)
            acc = x[:, start * hw:(start + 1) * hw]
            for s in range(start + 1, end):
                acc = acc + x[:, s * hw:(s + 1) * hw]
            o_ref[:, t * hw:(t + 1) * hw] = (acc * inv).astype(o_ref.dtype)

    return kernel


def _choose_tile_bc(bc: int, row_bytes: int) -> int:
    """Pick how many (b, c) rows to process per grid step.

    Target ~4 MiB per (double-buffered) input tile so DMAs are long and the
    ~0.35 us per-grid-step overhead is amortized, while staying far below the
    v7x 64 MiB / default 32 MiB scoped VMEM budget even with in+out double
    buffering.  Keep the sublane dim a multiple of 8 (or the full extent).
    """
    target_bytes = 4 * 1024 * 1024
    tile_bc = max(1, target_bytes // max(1, row_bytes))
    tile_bc = min(tile_bc, bc)
    if bc >= 8:
        tile_bc = max(8, (tile_bc // 8) * 8)
    else:
        tile_bc = bc                                    # block == full array dim
    return tile_bc


def adaptive_avg_pool_temporal(feats: jnp.ndarray, t_out: int) -> jnp.ndarray:
    """AdaptiveAvgPool3d((t_out, H, W)) on (B, C, T, H, W) via Pallas."""
    B, C, T, H, W = feats.shape
    HW = H * W
    BC = B * C

    x = feats.reshape(BC, T * HW)                       # lane-dense 2D slab
    elem_bytes = jnp.dtype(feats.dtype).itemsize
    tile_bc = _choose_tile_bc(BC, T * HW * elem_bytes)
    grid = pl.cdiv(BC, tile_bc)

    out = pl.pallas_call(
        _make_pool_kernel(T, t_out, HW),
        out_shape=jax.ShapeDtypeStruct((BC, t_out * HW), feats.dtype),
        grid_spec=pltpu.PrefetchScalarGridSpec(
            num_scalar_prefetch=0,
            grid=(grid,),
            in_specs=[pl.BlockSpec((tile_bc, T * HW), lambda i: (i, 0))],
            out_specs=pl.BlockSpec((tile_bc, t_out * HW), lambda i: (i, 0)),
        ),
        compiler_params=pltpu.CompilerParams(
            dimension_semantics=("parallel",)),
    )(x)

    return out.reshape(B, C, t_out, H, W)


def vit_head_forward(data, temporal_resolution: int):
    feats = data["features"]                            # (B, C, T, H, W)
    B, C, T, H, W = feats.shape

    pooled = adaptive_avg_pool_temporal(feats, temporal_resolution)

    mask = jnp.zeros((B, H, W), dtype=jnp.bool_)        # torch.zeros(..., dtype=bool)

    # TODO(synk): `build_encoder(config)` is external to this module; the encoder
    # forward (feats, mask, roi_features, region_info, roi_masks) is not defined
    # here, so the pooled features are returned as the head outputs.
    outputs = pooled
    del mask
    return {"outputs": outputs}


if __name__ == "__main__":
    key = jax.random.PRNGKey(0)
    k1, k2, k3 = jax.random.split(key, 3)

    # Small shapes consistent with the forward: (B, C, T, H, W)
    B, C, T, H, W = 2, 4, 8, 16, 16
    temporal_resolution = 4

    feats = jax.random.normal(k1, (B, C, T, H, W), dtype=jnp.float32)
    roi_features = jax.random.normal(k2, (B, 4, C), dtype=jnp.float32)
    region_info = jax.random.normal(k3, (B, 4, 4), dtype=jnp.float32)
    roi_masks = jnp.ones((B, 4), dtype=jnp.bool_)

    data = {
        "features": feats,
        "roi_features": roi_features,
        "region_info": region_info,
        "roi_masks": roi_masks,
    }

    result = vit_head_forward(data, temporal_resolution)
    out = jax.block_until_ready(result["outputs"])

    # Reference 1: T % t_out == 0 -> uniform mean over equal windows.
    ref = feats.reshape(B, C, temporal_resolution, T // temporal_resolution, H, W).mean(axis=3)
    assert out.shape == (B, C, temporal_resolution, H, W)
    assert jnp.allclose(out, ref, atol=1e-5, rtol=1e-5)

    # Reference 2: adaptive (non-divisible) case, T=6 -> t_out=4.
    T2 = 6
    feats2 = jax.random.normal(jax.random.PRNGKey(1), (B, C, T2, H, W), dtype=jnp.float32)
    out2 = jax.block_until_ready(adaptive_avg_pool_temporal(feats2, temporal_resolution))
    ref2 = jnp.stack(
        [feats2[:, :, s:e].mean(axis=2) for (s, e) in _adaptive_windows(T2, temporal_resolution)],
        axis=2,
    )
    assert out2.shape == (B, C, temporal_resolution, H, W)
    assert jnp.allclose(out2, ref2, atol=1e-5, rtol=1e-5)

    print("KERNEL_OK")
</pallas_src>

<mosaic_0001>
module attributes {stable_mosaic.version = 11 : i64} {
  func.func @kernel(%arg0: i32, %arg1: memref<8x2048xf32, #tpu.memory_space<vmem>>, %arg2: memref<8x1024xf32, #tpu.memory_space<vmem>>) attributes {dimension_semantics = [#tpu.dimension_semantics<parallel>], iteration_bounds = array<i64: 1>, scalar_prefetch = 0 : i64, scratch_operands = 0 : i64, tpu.core_type = #tpu.core_type<tc>, window_params = [{transform_indices = @transform_0, window_bounds = array<i64: 8, 2048>}, {transform_indices = @transform_1, window_bounds = array<i64: 8, 1024>}]} {
    %c0 = arith.constant 0 : index
    %c0_0 = arith.constant 0 : index
    %0 = vector.load %arg1[%c0, %c0_0] : memref<8x2048xf32, #tpu.memory_space<vmem>>, vector<8x2048xf32>
    %1 = vector.extract_strided_slice %0 {offsets = [0, 0], sizes = [8, 256], strides = [1, 1]} : vector<8x2048xf32> to vector<8x256xf32>
    %2 = vector.extract_strided_slice %0 {offsets = [0, 256], sizes = [8, 256], strides = [1, 1]} : vector<8x2048xf32> to vector<8x256xf32>
    %3 = arith.addf %1, %2 : vector<8x256xf32>
    %cst = arith.constant 5.000000e-01 : f32
    %4 = vector.broadcast %cst : f32 to vector<8x256xf32>
    %5 = arith.mulf %3, %4 : vector<8x256xf32>
    %c0_1 = arith.constant 0 : index
    %c0_2 = arith.constant 0 : index
    %6 = vector.load %arg2[%c0_1, %c0_2] : memref<8x1024xf32, #tpu.memory_space<vmem>>, vector<8x256xf32>
    tpu.vector_store %arg2[%c0_1, %c0_2], %5 {strides = array<i32>} : memref<8x1024xf32, #tpu.memory_space<vmem>>, vector<8x256xf32>,
    %7 = vector.extract_strided_slice %0 {offsets = [0, 512], sizes = [8, 256], strides = [1, 1]} : vector<8x2048xf32> to vector<8x256xf32>
    %8 = vector.extract_strided_slice %0 {offsets = [0, 768], sizes = [8, 256], strides = [1, 1]} : vector<8x2048xf32> to vector<8x256xf32>
    %9 = arith.addf %7, %8 : vector<8x256xf32>
    %cst_3 = arith.constant 5.000000e-01 : f32
    %10 = vector.broadcast %cst_3 : f32 to vector<8x256xf32>
    %11 = arith.mulf %9, %10 : vector<8x256xf32>
    %c0_4 = arith.constant 0 : index
    %c256 = arith.constant 256 : index
    %12 = vector.load %arg2[%c0_4, %c256] : memref<8x1024xf32, #tpu.memory_space<vmem>>, vector<8x256xf32>
    tpu.vector_store %arg2[%c0_4, %c256], %11 {strides = array<i32>} : memref<8x1024xf32, #tpu.memory_space<vmem>>, vector<8x256xf32>,
    %13 = vector.extract_strided_slice %0 {offsets = [0, 1024], sizes = [8, 256], strides = [1, 1]} : vector<8x2048xf32> to vector<8x256xf32>
    %14 = vector.extract_strided_slice %0 {offsets = [0, 1280], sizes = [8, 256], strides = [1, 1]} : vector<8x2048xf32> to vector<8x256xf32>
    %15 = arith.addf %13, %14 : vector<8x256xf32>
    %cst_5 = arith.constant 5.000000e-01 : f32
    %16 = vector.broadcast %cst_5 : f32 to vector<8x256xf32>
    %17 = arith.mulf %15, %16 : vector<8x256xf32>
    %c0_6 = arith.constant 0 : index
    %c512 = arith.constant 512 : index
    %18 = vector.load %arg2[%c0_6, %c512] : memref<8x1024xf32, #tpu.memory_space<vmem>>, vector<8x256xf32>
    tpu.vector_store %arg2[%c0_6, %c512], %17 {strides = array<i32>} : memref<8x1024xf32, #tpu.memory_space<vmem>>, vector<8x256xf32>,
    %19 = vector.extract_strided_slice %0 {offsets = [0, 1536], sizes = [8, 256], strides = [1, 1]} : vector<8x2048xf32> to vector<8x256xf32>
    %20 = vector.extract_strided_slice %0 {offsets = [0, 1792], sizes = [8, 256], strides = [1, 1]} : vector<8x2048xf32> to vector<8x256xf32>
    %21 = arith.addf %19, %20 : vector<8x256xf32>
    %cst_7 = arith.constant 5.000000e-01 : f32
    %22 = vector.broadcast %cst_7 : f32 to vector<8x256xf32>
    %23 = arith.mulf %21, %22 : vector<8x256xf32>
    %c0_8 = arith.constant 0 : index
    %c768 = arith.constant 768 : index
    %24 = vector.load %arg2[%c0_8, %c768] : memref<8x1024xf32, #tpu.memory_space<vmem>>, vector<8x256xf32>
    tpu.vector_store %arg2[%c0_8, %c768], %23 {strides = array<i32>} : memref<8x1024xf32, #tpu.memory_space<vmem>>, vector<8x256xf32>,
    return
  }
  func.func @transform_0(%arg0: i32) -> (i32, i32) {
    %c0_i32 = arith.constant 0 : i32
    %c0_i32_0 = arith.constant 0 : i32
    return %arg0, %c0_i32 : i32, i32
  }
  func.func @transform_1(%arg0: i32) -> (i32, i32) {
    %c0_i32 = arith.constant 0 : i32
    %c0_i32_0 = arith.constant 0 : i32
    return %arg0, %c0_i32 : i32, i32
  }
}

</mosaic_0001>

<llo_original>
// kernel: tpu_custom_call.1
$region0: #{tpu_custom_call.1}
  #allocation0 [shape = 'u32[]', space=smem, size = 0x4, offset = 0x4, fixed_abs, tag = 'smem constant byte address 0x4 - core index']
  #allocation1 [shape = 'u32[144,128]{1,0:T(1,128)}', space=vmem, size = 0x12000, scoped, tag = 'internal scratch']
  %s0 = inlined_call_operand.hbm [shape: f32[8,2048], index: 0, kind: input, shape index: {}]
  %s1 = inlined_call_operand.hbm [shape: f32[8,1024], index: 1, kind: output, shape index: {}]
  %s2 = sld [smem:[#allocation0]]
  $region18: #{tpu_custom_call.1} parent=0
    _
  %s4 = ssub.s32 1, %s2
  %s5 = scalar_select 0, %s4, %s2
  $region1: #{tpu_custom_call.1} parent=0
    #allocation2 [shape = 'u8[65536]{0}', space=vmem, size = 0x10000, scoped, tag = 'input window, operand 0, single buffered']
    #allocation3 [shape = 's32[1]{0}', space=sflag, size = 0x4, scoped, tag = 'scoped memory for tpu_custom_call.1']
    #allocation4 [shape = 's32[1]{0}', space=sflag, size = 0x4, scoped, tag = 'scoped memory for tpu_custom_call.1']
    #allocation5 [shape = 'u8[32768]{0}', space=vmem, size = 0x8000, scoped, tag = 'output window, operand 0, single buffered']
    %6 = vsyncpa [#allocation3], 0
    %7 = vsyncpa [#allocation4], 0
    // Predicated region
    $region2: #{tpu_custom_call.1} parent=1 // pred_check
      _
    $region3: #{tpu_custom_call.1} parent=1 // pred_check_branch
      %9 = sbr.rel (0) target = $region5
    $region4: #{tpu_custom_call.1} parent=1 // pred_region
      %s11 = ssub.s32 2048, 2048
      %12 = vsyncadd [#allocation3], %s11
      %s14 = sshll.u32 [#allocation2], 4
      %s15 = int_to_ptr.vmem [resolvable:$true] %s14
      %17 = dma.hbm_to_vmem [thread:$0]  %s0, 2048, %s15, [#allocation3]
    $region5: #{tpu_custom_call.1} parent=1 // pred_fallthru
      _
    // Predicated region
    $region6: #{tpu_custom_call.1} parent=1 // pred_check
      _
    $region7: #{tpu_custom_call.1} parent=1 // pred_check_branch
      %19 = sbr.rel (0) target = $region9
    $region8: #{tpu_custom_call.1} parent=1 // pred_region
      %20 = dma.done [#allocation3], 2048
    $region9: #{tpu_custom_call.1} parent=1 // pred_fallthru
      _
    %v21 = vld [vmem:[#allocation2] sm:$0xff]
    %v22 = vld [vmem:[#allocation2 + $0x8] sm:$0xff]
    %v23 = vld [vmem:[#allocation2 + $0x10] sm:$0xff]
    %v24 = vld [vmem:[#allocation2 + $0x18] sm:$0xff]
    %v25 = vld [vmem:[#allocation2 + $0x20] sm:$0xff]
    %v26 = vld [vmem:[#allocation2 + $0x28] sm:$0xff]
    %v27 = vld [vmem:[#allocation2 + $0x30] sm:$0xff]
    %v28 = vld [vmem:[#allocation2 + $0x38] sm:$0xff]
    %v29 = vld [vmem:[#allocation2 + $0x40] sm:$0xff]
    %v30 = vld [vmem:[#allocation2 + $0x48] sm:$0xff]
    %v31 = vld [vmem:[#allocation2 + $0x50] sm:$0xff]
    %v32 = vld [vmem:[#allocation2 + $0x58] sm:$0xff]
    %v33 = vld [vmem:[#allocation2 + $0x60] sm:$0xff]
    %v34 = vld [vmem:[#allocation2 + $0x68] sm:$0xff]
    %v35 = vld [vmem:[#allocation2 + $0x70] sm:$0xff]
    %v36 = vld [vmem:[#allocation2 + $0x78] sm:$0xff]
    %v37 = vadd.f32 %v21, %v23
    %v38 = vadd.f32 %v22, %v24
    %v39 = vmul.f32 %v37, 0.5
    %v40 = vmul.f32 %v38, 0.5
    %41 = vst [vmem:[#allocation5] sm:$0xff] %v39
    %42 = vst [vmem:[#allocation5 + $0x8] sm:$0xff] %v40
    %v43 = vadd.f32 %v25, %v27
    %v44 = vadd.f32 %v26, %v28
    %v45 = vmul.f32 %v43, 0.5
    %v46 = vmul.f32 %v44, 0.5
    %47 = vst [vmem:[#allocation5 + $0x10] sm:$0xff] %v45
    %48 = vst [vmem:[#allocation5 + $0x18] sm:$0xff] %v46
    %v49 = vadd.f32 %v29, %v31
    %v50 = vadd.f32 %v30, %v32
    %v51 = vmul.f32 %v49, 0.5
    %v52 = vmul.f32 %v50, 0.5
    %53 = vst [vmem:[#allocation5 + $0x20] sm:$0xff] %v51
    %54 = vst [vmem:[#allocation5 + $0x28] sm:$0xff] %v52
    %v55 = vadd.f32 %v33, %v35
    %v56 = vadd.f32 %v34, %v36
    %v57 = vmul.f32 %v55, 0.5
    %v58 = vmul.f32 %v56, 0.5
    %59 = vst [vmem:[#allocation5 + $0x30] sm:$0xff] %v57
    %60 = vst [vmem:[#allocation5 + $0x38] sm:$0xff] %v58
    // Predicated region
    $region10: #{tpu_custom_call.1} parent=1 // pred_check
      _
    $region11: #{tpu_custom_call.1} parent=1 // pred_check_branch
      %62 = sbr.rel (0) target = $region13
    $region12: #{tpu_custom_call.1} parent=1 // pred_region
      %s64 = ssub.s32 1024, 1024
      %65 = vsyncadd [#allocation4], %s64
      %s67 = sshll.u32 [#allocation5], 4
      %s68 = int_to_ptr.vmem [resolvable:$true] %s67
      %70 = dma.vmem_to_hbm [thread:$0]  %s68, 1024, %s1, [#allocation4]
    $region13: #{tpu_custom_call.1} parent=1 // pred_fallthru
      _
    // Predicated region
    $region14: #{tpu_custom_call.1} parent=1 // pred_check
      _
    $region15: #{tpu_custom_call.1} parent=1 // pred_check_branch
      %72 = sbr.rel (0) target = $region17
    $region16: #{tpu_custom_call.1} parent=1 // pred_region
      %73 = dma.done [#allocation4], 1024
    $region17: #{tpu_custom_call.1} parent=1 // pred_fallthru
      _
    %74 = vsyncpa [#allocation3], 1
    %75 = vsyncpa [#allocation4], 1

</llo_original>
